<compile_context>
chip_gen: v6e
topology: v6e:2x2x1
jax: 0.10.0
libtpu: 0.0.40
codegen_flags: <defaults>
</compile_context>

<pallas_src>
from functools import partial

import jax
import jax.numpy as jnp
from jax.experimental import pallas as pl
from jax.experimental.pallas import tpu as pltpu

HIDDEN = 32        # logical hidden width (nn.Linear(n_state, 32))
LANE = 128         # TPU lane width
MAX_TB = 1024      # max batch-tile rows (amortizes per-grid-step overhead)
_NEG = -1e30       # bias mask for padded logit columns (exp underflows to 0)


def actor_kernel(x_ref, w1_ref, b1_ref, w2_ref, b2_ref, w3_ref, b3_ref, o_ref):
    x = x_ref[...]

    # fc1 + ReLU  (lane-padded hidden width -> full 128-lane vregs / MXU passes)
    h = jnp.dot(x, w1_ref[...], preferred_element_type=jnp.float32) + b1_ref[...]
    h = jnp.maximum(h, 0.0)

    # fc2 + ReLU
    h = jnp.dot(h, w2_ref[...], preferred_element_type=jnp.float32) + b2_ref[...]
    h = jnp.maximum(h, 0.0)

    # output_linear: padded logit columns carry bias=_NEG -> never win the max,
    # exp underflows to 0, so log_softmax over the real columns is exact.
    logits = jnp.dot(h, w3_ref[...], preferred_element_type=jnp.float32) + b3_ref[...]

    m = jnp.max(logits, axis=-1, keepdims=True)
    shifted = logits - m
    lse = jnp.log(jnp.sum(jnp.exp(shifted), axis=-1, keepdims=True))

    # Store only the real n_act columns (o_ref is (TB, n_act)): the HBM
    # writeback DMA stays contiguous and is 128/n_act times smaller.
    n_act = o_ref.shape[-1]
    o_ref[...] = (shifted - lse)[:, :n_act].astype(o_ref.dtype)


def _round_up(x, m):
    return (x + m - 1) // m * m


def _batch_tiling(B):
    """Pick (TB, B_pad): sublane-aligned tile, TB <= MAX_TB, minimal padding
    waste, and >= 2 grid steps once B >= 256 (so the 'parallel' batch axis can
    shard across v7x's two TensorCores; an extra tile is ~free on v5e/v6e)."""
    min_tiles = 2 if B >= 256 else 1
    n_tiles = max(min_tiles, pl.cdiv(B, MAX_TB))
    TB = _round_up(pl.cdiv(B, n_tiles), 8)
    return TB, n_tiles * TB


def _const_spec(shape):
    """Weight/bias spec: constant index_map -> stays VMEM-resident across the
    grid. Single-buffered (no redundant second buffer / phantom DMA slot) when
    the running JAX supports per-BlockSpec pipeline_mode."""
    try:
        return pl.BlockSpec(shape, lambda i: (0, 0), pipeline_mode=pl.Buffered(1))
    except (AttributeError, TypeError):
        return pl.BlockSpec(shape, lambda i: (0, 0))


def prepare_params(params):
    """Pad/mask the logical weights to a lane-dense layout ONCE (outside the
    hot loop). Feature dims are zero-padded to multiples of 128 lanes; padded
    logit columns get bias=_NEG. Returns (padded_params_dict, n_act)."""
    w1, b1 = params["w1"], params["b1"]
    w2, b2 = params["w2"], params["b2"]
    w3, b3 = params["w3"], params["b3"]
    n_state, hidden = w1.shape
    n_act = w3.shape[1]
    h_pad = _round_up(hidden, LANE)
    n_pad = _round_up(n_act, LANE)

    w1p = jnp.zeros((n_state, h_pad), jnp.float32).at[:, :hidden].set(w1)
    b1p = jnp.zeros((1, h_pad), jnp.float32).at[:, :hidden].set(b1.reshape(1, -1))
    w2p = jnp.zeros((h_pad, h_pad), jnp.float32).at[:hidden, :hidden].set(w2)
    b2p = jnp.zeros((1, h_pad), jnp.float32).at[:, :hidden].set(b2.reshape(1, -1))
    w3p = jnp.zeros((h_pad, n_pad), jnp.float32).at[:hidden, :n_act].set(w3)
    b3p = jnp.full((1, n_pad), _NEG, jnp.float32).at[:, :n_act].set(b3.reshape(1, -1))
    padded = {"w1p": w1p, "b1p": b1p, "w2p": w2p, "b2p": b2p, "w3p": w3p, "b3p": b3p}
    return padded, int(n_act)


@partial(jax.jit, static_argnums=(2,))
def actor_forward(x, padded, n_act):
    """x: (B, n_state) float32. padded: output of prepare_params. n_act: static."""
    B, n_state = x.shape
    w1p, b1p = padded["w1p"], padded["b1p"]
    w2p, b2p = padded["w2p"], padded["b2p"]
    w3p, b3p = padded["w3p"], padded["b3p"]
    h_pad = w1p.shape[1]
    n_pad = w3p.shape[1]

    TB, B_pad = _batch_tiling(B)
    if B_pad != B:  # at most n_tiles*7 extra rows; far cheaper than padding to 512/1024
        x = jnp.pad(x, ((0, B_pad - B), (0, 0)))
    grid = (B_pad // TB,)

    # VMEM budget from the lane-padded footprint (x tile and intermediates are
    # padded to 128 lanes in VMEM), floored at 16 MiB -- still far under the
    # 32 MiB scoped default / v7x's 64 MiB physical.
    x_lanes = _round_up(n_state, LANE)
    tile_bytes = (2 * TB * x_lanes            # double-buffered x tile
                  + 2 * TB * LANE             # double-buffered output tile (lane-padded)
                  + 4 * TB * max(h_pad, n_pad)  # hidden/logit intermediates headroom
                  ) * 4
    w_bytes = (_round_up(n_state, 8) * h_pad + h_pad * h_pad + h_pad * n_pad
               + 8 * (2 * h_pad + n_pad)) * 4   # resident (single-buffered) weights
    vmem_limit = int(min(48 << 20, max(16 << 20, 2 * (tile_bytes + w_bytes))))

    flops = 2 * B_pad * (n_state * h_pad + h_pad * h_pad + h_pad * n_pad)
    bytes_accessed = (B_pad * n_state + B_pad * n_act) * 4 + w_bytes
    cost = pl.CostEstimate(flops=flops,
                           transcendentals=B_pad * (n_pad + 1),
                           bytes_accessed=bytes_accessed)

    out = pl.pallas_call(
        actor_kernel,
        out_shape=jax.ShapeDtypeStruct((B_pad, n_act), jnp.float32),
        grid=grid,
        in_specs=[
            pl.BlockSpec((TB, n_state), lambda i: (i, 0)),  # batch-tiled activations
            _const_spec(w1p.shape), _const_spec(b1p.shape),  # resident padded weights
            _const_spec(w2p.shape), _const_spec(b2p.shape),
            _const_spec(w3p.shape), _const_spec(b3p.shape),
        ],
        out_specs=pl.BlockSpec((TB, n_act), lambda i: (i, 0)),  # real-width output
        compiler_params=pltpu.CompilerParams(
            dimension_semantics=("parallel",),
            vmem_limit_bytes=vmem_limit,
        ),
        cost_estimate=cost,
    )(x, w1p, b1p, w2p, b2p, w3p, b3p)

    return out if B_pad == B else out[:B]  # row-only slice; no lane re-slice


def init_params(key, n_state, n_act, hidden=HIDDEN):
    """Deterministic init mimicking nn.Linear's U(-1/sqrt(fan_in), 1/sqrt(fan_in)).
    Weights stored transposed: (in_features, out_features); biases 1D."""
    ks = jax.random.split(key, 6)

    def lin(kw, kb, fan_in, fan_out):
        bound = 1.0 / jnp.sqrt(fan_in)
        w = jax.random.uniform(kw, (fan_in, fan_out), jnp.float32, -bound, bound)
        b = jax.random.uniform(kb, (fan_out,), jnp.float32, -bound, bound)
        return w, b

    w1, b1 = lin(ks[0], ks[1], n_state, hidden)
    w2, b2 = lin(ks[2], ks[3], hidden, hidden)
    w3, b3 = lin(ks[4], ks[5], hidden, n_act)
    return {"w1": w1, "b1": b1, "w2": w2, "b2": b2, "w3": w3, "b3": b3}


def actor_ref(x, p):
    """Pure-JAX reference for correctness check."""
    h = jnp.maximum(x @ p["w1"] + p["b1"], 0.0)
    h = jnp.maximum(h @ p["w2"] + p["b2"], 0.0)
    logits = h @ p["w3"] + p["b3"]
    return jax.nn.log_softmax(logits, axis=-1)


if __name__ == "__main__":
    key = jax.random.PRNGKey(0)
    k_x, k_p = jax.random.split(key)

    B, n_state, n_act = 8, 16, 8
    x = jax.random.normal(k_x, (B, n_state), jnp.float32)
    params = init_params(k_p, n_state, n_act)
    padded, n_act_s = prepare_params(params)  # pad/mask weights once, outside the hot loop

    out = jax.block_until_ready(actor_forward(x, padded, n_act_s))
    ref = actor_ref(x, params)
    assert out.shape == (B, n_act)
    assert jnp.allclose(out, ref, atol=1e-5, rtol=1e-5), "mismatch vs reference"

    # Batch needing sublane padding (single tile path).
    x2 = jax.random.normal(k_x, (70, n_state), jnp.float32)
    out2 = jax.block_until_ready(actor_forward(x2, padded, n_act_s))
    assert out2.shape == (70, n_act)
    assert jnp.allclose(out2, actor_ref(x2, params), atol=1e-5, rtol=1e-5)

    # Batch large enough to split into >= 2 tiles (megacore / pipelined path).
    x3 = jax.random.normal(k_x, (300, n_state), jnp.float32)
    out3 = jax.block_until_ready(actor_forward(x3, padded, n_act_s))
    assert out3.shape == (300, n_act)
    assert jnp.allclose(out3, actor_ref(x3, params), atol=1e-5, rtol=1e-5)

    print("KERNEL_OK")
</pallas_src>

<mosaic_0001>
module attributes {stable_mosaic.version = 11 : i64} {
  func.func @actor_kernel(%arg0: i32, %arg1: memref<8x16xf32, #tpu.memory_space<vmem>>, %arg2: memref<16x128xf32, #tpu.memory_space<vmem>>, %arg3: memref<1x128xf32, #tpu.memory_space<vmem>>, %arg4: memref<128x128xf32, #tpu.memory_space<vmem>>, %arg5: memref<1x128xf32, #tpu.memory_space<vmem>>, %arg6: memref<128x128xf32, #tpu.memory_space<vmem>>, %arg7: memref<1x128xf32, #tpu.memory_space<vmem>>, %arg8: memref<8x8xf32, #tpu.memory_space<vmem>>) attributes {dimension_semantics = [#tpu.dimension_semantics<parallel>], iteration_bounds = array<i64: 1>, scalar_prefetch = 0 : i64, scratch_operands = 0 : i64, tpu.core_type = #tpu.core_type<tc>, window_params = [{transform_indices = @transform_0, window_bounds = array<i64: 8, 16>}, {pipeline_mode = #tpu.pipeline_mode<synchronous>, transform_indices = @transform_1, window_bounds = array<i64: 16, 128>}, {pipeline_mode = #tpu.pipeline_mode<synchronous>, transform_indices = @transform_2, window_bounds = array<i64: 1, 128>}, {pipeline_mode = #tpu.pipeline_mode<synchronous>, transform_indices = @transform_3, window_bounds = array<i64: 128, 128>}, {pipeline_mode = #tpu.pipeline_mode<synchronous>, transform_indices = @transform_4, window_bounds = array<i64: 1, 128>}, {pipeline_mode = #tpu.pipeline_mode<synchronous>, transform_indices = @transform_5, window_bounds = array<i64: 128, 128>}, {pipeline_mode = #tpu.pipeline_mode<synchronous>, transform_indices = @transform_6, window_bounds = array<i64: 1, 128>}, {transform_indices = @transform_7, window_bounds = array<i64: 8, 8>}]} {
    %c0 = arith.constant 0 : index
    %c0_0 = arith.constant 0 : index
    %0 = vector.load %arg1[%c0, %c0_0] : memref<8x16xf32, #tpu.memory_space<vmem>>, vector<8x16xf32>
    %c0_1 = arith.constant 0 : index
    %c0_2 = arith.constant 0 : index
    %1 = vector.load %arg2[%c0_1, %c0_2] : memref<16x128xf32, #tpu.memory_space<vmem>>, vector<16x128xf32>
    %cst = arith.constant dense<0.000000e+00> : vector<8x128xf32>
    %2 = tpu.matmul %0, %1, %cst {dimension_numbers = #tpu.dot_dimension_numbers<[1], [0], [0], [1], [0, 0, 1, 1], [], []>} : vector<8x16xf32>, vector<16x128xf32>, vector<8x128xf32> -> vector<8x128xf32>
    %c0_3 = arith.constant 0 : index
    %c0_4 = arith.constant 0 : index
    %3 = vector.load %arg3[%c0_3, %c0_4] : memref<1x128xf32, #tpu.memory_space<vmem>>, vector<1x128xf32>
    %4 = vector.broadcast %3 : vector<1x128xf32> to vector<8x128xf32>
    %5 = arith.addf %2, %4 : vector<8x128xf32>
    %cst_5 = arith.constant 0.000000e+00 : f32
    %6 = vector.broadcast %cst_5 : f32 to vector<8x128xf32>
    %7 = arith.maximumf %5, %6 : vector<8x128xf32>
    %c0_6 = arith.constant 0 : index
    %c0_7 = arith.constant 0 : index
    %8 = vector.load %arg4[%c0_6, %c0_7] : memref<128x128xf32, #tpu.memory_space<vmem>>, vector<128x128xf32>
    %cst_8 = arith.constant dense<0.000000e+00> : vector<8x128xf32>
    %9 = tpu.matmul %7, %8, %cst_8 {dimension_numbers = #tpu.dot_dimension_numbers<[1], [0], [0], [1], [0, 0, 1, 1], [], []>} : vector<8x128xf32>, vector<128x128xf32>, vector<8x128xf32> -> vector<8x128xf32>
    %c0_9 = arith.constant 0 : index
    %c0_10 = arith.constant 0 : index
    %10 = vector.load %arg5[%c0_9, %c0_10] : memref<1x128xf32, #tpu.memory_space<vmem>>, vector<1x128xf32>
    %11 = vector.broadcast %10 : vector<1x128xf32> to vector<8x128xf32>
    %12 = arith.addf %9, %11 : vector<8x128xf32>
    %cst_11 = arith.constant 0.000000e+00 : f32
    %13 = vector.broadcast %cst_11 : f32 to vector<8x128xf32>
    %14 = arith.maximumf %12, %13 : vector<8x128xf32>
    %c0_12 = arith.constant 0 : index
    %c0_13 = arith.constant 0 : index
    %15 = vector.load %arg6[%c0_12, %c0_13] : memref<128x128xf32, #tpu.memory_space<vmem>>, vector<128x128xf32>
    %cst_14 = arith.constant dense<0.000000e+00> : vector<8x128xf32>
    %16 = tpu.matmul %14, %15, %cst_14 {dimension_numbers = #tpu.dot_dimension_numbers<[1], [0], [0], [1], [0, 0, 1, 1], [], []>} : vector<8x128xf32>, vector<128x128xf32>, vector<8x128xf32> -> vector<8x128xf32>
    %c0_15 = arith.constant 0 : index
    %c0_16 = arith.constant 0 : index
    %17 = vector.load %arg7[%c0_15, %c0_16] : memref<1x128xf32, #tpu.memory_space<vmem>>, vector<1x128xf32>
    %18 = vector.broadcast %17 : vector<1x128xf32> to vector<8x128xf32>
    %19 = arith.addf %16, %18 : vector<8x128xf32>
    %cst_17 = arith.constant dense<0xFF800000> : vector<8xf32>
    %20 = vector.multi_reduction <maximumf>, %19, %cst_17 [1] : vector<8x128xf32> to vector<8xf32>
    %21 = vector.shape_cast %20 : vector<8xf32> to vector<8x1xf32>
    %22 = vector.broadcast %21 : vector<8x1xf32> to vector<8x128xf32>
    %23 = arith.subf %19, %22 : vector<8x128xf32>
    %24 = math.exp %23 : vector<8x128xf32>
    %cst_18 = arith.constant dense<0.000000e+00> : vector<8xf32>
    %25 = vector.multi_reduction <add>, %24, %cst_18 [1] : vector<8x128xf32> to vector<8xf32>
    %26 = vector.shape_cast %25 : vector<8xf32> to vector<8x1xf32>
    %27 = math.log %26 : vector<8x1xf32>
    %28 = vector.broadcast %27 : vector<8x1xf32> to vector<8x128xf32>
    %29 = arith.subf %23, %28 : vector<8x128xf32>
    %30 = vector.extract_strided_slice %29 {offsets = [0, 0], sizes = [8, 8], strides = [1, 1]} : vector<8x128xf32> to vector<8x8xf32>
    %c0_19 = arith.constant 0 : index
    %c0_20 = arith.constant 0 : index
    %31 = vector.load %arg8[%c0_19, %c0_20] : memref<8x8xf32, #tpu.memory_space<vmem>>, vector<8x8xf32>
    tpu.vector_store %arg8[%c0_19, %c0_20], %30 {strides = array<i32>} : memref<8x8xf32, #tpu.memory_space<vmem>>, vector<8x8xf32>,
    return
  }
  func.func @transform_0(%arg0: i32) -> (i32, i32) {
    %c0_i32 = arith.constant 0 : i32
    %c0_i32_0 = arith.constant 0 : i32
    return %arg0, %c0_i32 : i32, i32
  }
  func.func @transform_1(%arg0: i32) -> (i32, i32) {
    %c0_i32 = arith.constant 0 : i32
    %c0_i32_0 = arith.constant 0 : i32
    %c0_i32_1 = arith.constant 0 : i32
    return %c0_i32, %c0_i32_0 : i32, i32
  }
  func.func @transform_2(%arg0: i32) -> (i32, i32) {
    %c0_i32 = arith.constant 0 : i32
    %c0_i32_0 = arith.constant 0 : i32
    %c0_i32_1 = arith.constant 0 : i32
    return %c0_i32, %c0_i32_0 : i32, i32
  }
  func.func @transform_3(%arg0: i32) -> (i32, i32) {
    %c0_i32 = arith.constant 0 : i32
    %c0_i32_0 = arith.constant 0 : i32
    %c0_i32_1 = arith.constant 0 : i32
    return %c0_i32, %c0_i32_0 : i32, i32
  }
  func.func @transform_4(%arg0: i32) -> (i32, i32) {
    %c0_i32 = arith.constant 0 : i32
    %c0_i32_0 = arith.constant 0 : i32
    %c0_i32_1 = arith.constant 0 : i32
    return %c0_i32, %c0_i32_0 : i32, i32
  }
  func.func @transform_5(%arg0: i32) -> (i32, i32) {
    %c0_i32 = arith.constant 0 : i32
    %c0_i32_0 = arith.constant 0 : i32
    %c0_i32_1 = arith.constant 0 : i32
    return %c0_i32, %c0_i32_0 : i32, i32
  }
  func.func @transform_6(%arg0: i32) -> (i32, i32) {
    %c0_i32 = arith.constant 0 : i32
    %c0_i32_0 = arith.constant 0 : i32
    %c0_i32_1 = arith.constant 0 : i32
    return %c0_i32, %c0_i32_0 : i32, i32
  }
  func.func @transform_7(%arg0: i32) -> (i32, i32) {
    %c0_i32 = arith.constant 0 : i32
    %c0_i32_0 = arith.constant 0 : i32
    return %arg0, %c0_i32 : i32, i32
  }
}

</mosaic_0001>

<llo_original>
// kernel: actor_forward.1
$region0: #{actor_forward.1}
  #allocation0 [shape = 'u32[]', space=smem, size = 0x4, offset = 0x4, fixed_abs, tag = 'smem constant byte address 0x4 - core index']
  #allocation1 [shape = 'u32[144,128]{1,0:T(1,128)}', space=vmem, size = 0x12000, scoped, tag = 'internal scratch']
  %s0 = inlined_call_operand.hbm [shape: f32[8,16], index: 0, kind: input, shape index: {}]
  %s1 = inlined_call_operand.hbm [shape: f32[16,128], index: 1, kind: input, shape index: {}]
  %s2 = inlined_call_operand.vmem [shape: f32[1,128], index: 2, kind: input, shape index: {}]
  %s3 = inlined_call_operand.hbm [shape: f32[128,128], index: 3, kind: input, shape index: {}]
  %s4 = inlined_call_operand.vmem [shape: f32[1,128], index: 4, kind: input, shape index: {}]
  %s5 = inlined_call_operand.hbm [shape: f32[128,128], index: 5, kind: input, shape index: {}]
  %s6 = inlined_call_operand.vmem [shape: f32[1,128], index: 6, kind: input, shape index: {}]
  %s7 = inlined_call_operand.hbm [shape: f32[8,8], index: 7, kind: output, shape index: {}]
  %s8 = sld [smem:[#allocation0]]
  $region54: #{actor_forward.1} parent=0
    _
  %s10 = ssub.s32 1, %s8
  %s11 = scalar_select 0, %s10, %s8
  $region1: #{actor_forward.1} parent=0
    #allocation2 [shape = 'u8[4096]{0}', space=vmem, size = 0x1000, scoped, tag = 'input window, operand 0, single buffered']
    #allocation3 [shape = 's32[1]{0}', space=sflag, size = 0x4, scoped, tag = 'scoped memory for actor_forward.1']
    #allocation4 [shape = 's32[1]{0}', space=sflag, size = 0x4, scoped, tag = 'scoped memory for actor_forward.1']
    #allocation5 [shape = 'u8[8192]{0}', space=vmem, size = 0x2000, scoped, tag = 'input window, operand 1, single buffered']
    #allocation6 [shape = 's32[1]{0}', space=sflag, size = 0x4, scoped, tag = 'scoped memory for actor_forward.1']
    #allocation7 [shape = 'u8[65536]{0}', space=vmem, size = 0x10000, scoped, tag = 'input window, operand 3, single buffered']
    #allocation8 [shape = 'u8[65536]{0}', space=vmem, size = 0x10000, scoped, tag = 'input window, operand 5, single buffered']
    #allocation9 [shape = 's32[1]{0}', space=sflag, size = 0x4, scoped, tag = 'scoped memory for actor_forward.1']
    #allocation10 [shape = 'u8[4096]{0}', space=vmem, size = 0x1000, scoped, tag = 'output window, operand 0, single buffered']
    %12 = vsyncpa [#allocation3], 0
    %13 = vsyncpa [#allocation6], 0
    %14 = vsyncpa [#allocation9], 0
    %15 = vsyncpa [#allocation4], 0
    // Predicated region
    $region2: #{actor_forward.1} parent=1 // pred_check
      _
    $region3: #{actor_forward.1} parent=1 // pred_check_branch
      %17 = sbr.rel (0) target = $region5
    $region4: #{actor_forward.1} parent=1 // pred_region
      %s19 = ssub.s32 128, 128
      %20 = vsyncadd [#allocation3], %s19
      %s22 = sshll.u32 [#allocation2], 4
      %s23 = int_to_ptr.vmem [resolvable:$true] %s22
      %25 = dma.hbm_to_vmem [thread:$0]  %s0, 128, %s23, [#allocation3]
    $region5: #{actor_forward.1} parent=1 // pred_fallthru
      _
    // Predicated region
    $region6: #{actor_forward.1} parent=1 // pred_check
      _
    $region7: #{actor_forward.1} parent=1 // pred_check_branch
      %27 = sbr.rel (0) target = $region9
    $region8: #{actor_forward.1} parent=1 // pred_region
      %s29 = ssub.s32 256, 256
      %30 = vsyncadd [#allocation6], %s29
      %s31 = sshll.u32 [#allocation5], 4
      %s32 = int_to_ptr.vmem [resolvable:$true] %s31
      %37 = dma.hbm_to_vmem [thread:$0]  %s1, 256, %s32, [#allocation6], 128, 128, 8
    $region9: #{actor_forward.1} parent=1 // pred_fallthru
      _
    // Predicated region
    $region10: #{actor_forward.1} parent=1 // pred_check
      _
    $region11: #{actor_forward.1} parent=1 // pred_check_branch
      %39 = sbr.rel (0) target = $region13
    $region12: #{actor_forward.1} parent=1 // pred_region
      _
    $region13: #{actor_forward.1} parent=1 // pred_fallthru
      _
    // Predicated region
    $region14: #{actor_forward.1} parent=1 // pred_check
      _
    $region15: #{actor_forward.1} parent=1 // pred_check_branch
      %41 = sbr.rel (0) target = $region17
    $region16: #{actor_forward.1} parent=1 // pred_region
      %s43 = ssub.s32 2048, 2048
      %44 = vsyncadd [#allocation6], %s43
      %s45 = sshll.u32 [#allocation7], 4
      %s46 = int_to_ptr.vmem [resolvable:$true] %s45
      %51 = dma.hbm_to_vmem [thread:$0]  %s3, 2048, %s46, [#allocation6], 128, 128, 8
    $region17: #{actor_forward.1} parent=1 // pred_fallthru
      _
    // Predicated region
    $region18: #{actor_forward.1} parent=1 // pred_check
      _
    $region19: #{actor_forward.1} parent=1 // pred_check_branch
      %53 = sbr.rel (0) target = $region21
    $region20: #{actor_forward.1} parent=1 // pred_region
      _
    $region21: #{actor_forward.1} parent=1 // pred_fallthru
      _
    // Predicated region
    $region22: #{actor_forward.1} parent=1 // pred_check
      _
    $region23: #{actor_forward.1} parent=1 // pred_check_branch
      %55 = sbr.rel (0) target = $region25
    $region24: #{actor_forward.1} parent=1 // pred_region
      %s57 = ssub.s32 2048, 2048
      %58 = vsyncadd [#allocation9], %s57
      %s59 = sshll.u32 [#allocation8], 4
      %s60 = int_to_ptr.vmem [resolvable:$true] %s59
      %65 = dma.hbm_to_vmem [thread:$0]  %s5, 2048, %s60, [#allocation9], 128, 128, 8
    $region25: #{actor_forward.1} parent=1 // pred_fallthru
      _
    // Predicated region
    $region26: #{actor_forward.1} parent=1 // pred_check
      _
    $region27: #{actor_forward.1} parent=1 // pred_check_branch
      %67 = sbr.rel (0) target = $region29
    $region28: #{actor_forward.1} parent=1 // pred_region
      _
    $region29: #{actor_forward.1} parent=1 // pred_fallthru
      _
    // Predicated region
    $region30: #{actor_forward.1} parent=1 // pred_check
      _
    $region31: #{actor_forward.1} parent=1 // pred_check_branch
      %69 = sbr.rel (0) target = $region33
    $region32: #{actor_forward.1} parent=1 // pred_region
      %70 = dma.done [#allocation3], 128
    $region33: #{actor_forward.1} parent=1 // pred_fallthru
      _
    // Predicated region
    $region34: #{actor_forward.1} parent=1 // pred_check
      _
    $region35: #{actor_forward.1} parent=1 // pred_check_branch
      %72 = sbr.rel (0) target = $region37
    $region36: #{actor_forward.1} parent=1 // pred_region
      %73 = dma.done [#allocation6], 256
    $region37: #{actor_forward.1} parent=1 // pred_fallthru
      _
    // Predicated region
    $region38: #{actor_forward.1} parent=1 // pred_check
      _
    $region39: #{actor_forward.1} parent=1 // pred_check_branch
      %75 = sbr.rel (0) target = $region41
    $region40: #{actor_forward.1} parent=1 // pred_region
      %76 = dma.done [#allocation6], 2048
    $region41: #{actor_forward.1} parent=1 // pred_fallthru
      _
    // Predicated region
    $region42: #{actor_forward.1} parent=1 // pred_check
      _
    $region43: #{actor_forward.1} parent=1 // pred_check_branch
      %78 = sbr.rel (0) target = $region45
    $region44: #{actor_forward.1} parent=1 // pred_region
      %79 = dma.done [#allocation9], 2048
    $region45: #{actor_forward.1} parent=1 // pred_fallthru
      _
    %v80 = vld [vmem:[#allocation2] sm:$0xff]
    %v81 = vld [vmem:[#allocation5] sm:$0xff]
    %v82 = vld [vmem:[#allocation5 + $0x8] sm:$0xff]
    %v83 = vld [vmem:[%s2] sm:$0x1]
    %v85 = vlaneseq
    %v86 = vshrl.u32 %v85, 7
    %v87 = vsub.s32 0, %v86
    %v88 = vrot.slane %v83, %v87
    %vm90 = vcmask 130048
    %v92 = vsel %vm90, %v80, 0
    %94 = vmatprep.subr.mxu0 0.0
    %95 = vmatpush1.msra.mxu0 0.0
    %96 = vmatprep.subr.mxu0 0.0
    %97 = vmatpush1.msra.mxu0 0.0
    %98 = vmatprep.subr.mxu0 0.0
    %99 = vmatpush1.msra.mxu0 0.0
    %100 = vmatprep.subr.mxu0 0.0
    %101 = vmatpush1.msra.mxu0 0.0
    %102 = vmatprep.subr.mxu0 0.0
    %103 = vmatpush1.msra.mxu0 0.0
    %104 = vmatprep.subr.mxu0 0.0
    %105 = vmatpush1.msra.mxu0 0.0
    %106 = vmatprep.subr.mxu0 0.0
    %107 = vmatpush1.msra.mxu0 0.0
    %108 = vmatprep.subr.mxu0 0.0
    %109 = vmatpush1.msra.mxu0 0.0
    %110 = vmatprep.subr.mxu0 0.0
    %111 = vmatpush1.msra.mxu0 0.0
    %112 = vmatprep.subr.mxu0 0.0
    %113 = vmatpush1.msra.mxu0 0.0
    %114 = vmatprep.subr.mxu0 0.0
    %115 = vmatpush1.msra.mxu0 0.0
    %116 = vmatprep.subr.mxu0 0.0
    %117 = vmatpush1.msra.mxu0 0.0
    %118 = vmatprep.subr.mxu0 0.0
    %119 = vmatpush1.msra.mxu0 0.0
    %120 = vmatprep.subr.mxu0 0.0
    %121 = vmatpush1.msra.mxu0 0.0
    %122 = vmatprep.subr.mxu0 0.0
    %123 = vmatpush1.msra.mxu0 %v82
    %124 = vmatprep.subr.mxu0 0.0
    %125 = vmatpush1.msra.mxu0 %v81
    %126 = vmatprep.subr.mxu0 0.0
    %127 = vmatpush2.msra.mxu0 0.0
    %128 = vmatprep.subr.mxu0 0.0
    %129 = vmatpush2.msra.mxu0 0.0
    %130 = vmatprep.subr.mxu0 0.0
    %131 = vmatpush2.msra.mxu0 0.0
    %132 = vmatprep.subr.mxu0 0.0
    %133 = vmatpush2.msra.mxu0 0.0
    %134 = vmatprep.subr.mxu0 0.0
    %135 = vmatpush2.msra.mxu0 0.0
    %136 = vmatprep.subr.mxu0 0.0
    %137 = vmatpush2.msra.mxu0 0.0
    %138 = vmatprep.subr.mxu0 0.0
    %139 = vmatpush2.msra.mxu0 0.0
    %140 = vmatprep.subr.mxu0 0.0
    %141 = vmatpush2.msra.mxu0 0.0
    %142 = vmatprep.subr.mxu0 0.0
    %143 = vmatpush2.msra.mxu0 0.0
    %144 = vmatprep.subr.mxu0 0.0
    %145 = vmatpush2.msra.mxu0 0.0
    %146 = vmatprep.subr.mxu0 0.0
    %147 = vmatpush2.msra.mxu0 0.0
    %148 = vmatprep.subr.mxu0 0.0
    %149 = vmatpush2.msra.mxu0 0.0
    %150 = vmatprep.subr.mxu0 0.0
    %151 = vmatpush2.msra.mxu0 0.0
    %152 = vmatprep.subr.mxu0 0.0
    %153 = vmatpush2.msra.mxu0 0.0
    %154 = vmatprep.subr.mxu0 0.0
    %155 = vmatpush2.msra.mxu0 0.0
    %156 = vmatprep.subr.mxu0 0.0
    %157 = vmatpush2.msra.mxu0 0.0
    %158 = vmatprep.mubr.f32.mxu0 0.0
    %159 = vmatmul.mubr.f32.gmra.mxu0 %v92
    %v160 = vpop.f32.mrf.mxu0
    %v161 = vadd.f32 %v88, %v160
    %v162 = vpop.f32.mrf.mxu0
    %163 = vdwg.mxu0
    %v164 = vmax.f32 %v161, 0.0
    %v165 = vld [vmem:[#allocation7] sm:$0xff]
    %v166 = vld [vmem:[#allocation7 + $0x8] sm:$0xff]
    %v167 = vld [vmem:[#allocation7 + $0x10] sm:$0xff]
    %v168 = vld [vmem:[#allocation7 + $0x18] sm:$0xff]
    %v169 = vld [vmem:[#allocation7 + $0x20] sm:$0xff]
    %v170 = vld [vmem:[#allocation7 + $0x28] sm:$0xff]
    %v171 = vld [vmem:[#allocation7 + $0x30] sm:$0xff]
    %v172 = vld [vmem:[#allocation7 + $0x38] sm:$0xff]
    %v173 = vld [vmem:[#allocation7 + $0x40] sm:$0xff]
    %v174 = vld [vmem:[#allocation7 + $0x48] sm:$0xff]
    %v175 = vld [vmem:[#allocation7 + $0x50] sm:$0xff]
    %v176 = vld [vmem:[#allocation7 + $0x58] sm:$0xff]
    %v177 = vld [vmem:[#allocation7 + $0x60] sm:$0xff]
    %v178 = vld [vmem:[#allocation7 + $0x68] sm:$0xff]
    %v179 = vld [vmem:[#allocation7 + $0x70] sm:$0xff]
    %v180 = vld [vmem:[#allocation7 + $0x78] sm:$0xff]
    %v181 = vld [vmem:[%s4] sm:$0x1]
    %v183 = vlaneseq
    %v184 = vshrl.u32 %v183, 7
    %v185 = vsub.s32 0, %v184
    %v186 = vrot.slane %v181, %v185
    %188 = vmatprep.subr.mxu0 0.0
    %189 = vmatpush1.msra.mxu0 %v180
    %190 = vmatprep.subr.mxu0 0.0
    %191 = vmatpush1.msra.mxu0 %v179
    %192 = vmatprep.subr.mxu0 0.0
    %193 = vmatpush1.msra.mxu0 %v178
    %194 = vmatprep.subr.mxu0 0.0
    %195 = vmatpush1.msra.mxu0 %v177
    %196 = vmatprep.subr.mxu0 0.0
    %197 = vmatpush1.msra.mxu0 %v176
    %198 = vmatprep.subr.mxu0 0.0
    %199 = vmatpush1.msra.mxu0 %v175
    %200 = vmatprep.subr.mxu0 0.0
    %201 = vmatpush1.msra.mxu0 %v174
    %202 = vmatprep.subr.mxu0 0.0
    %203 = vmatpush1.msra.mxu0 %v173
    %204 = vmatprep.subr.mxu0 0.0
    %205 = vmatpush1.msra.mxu0 %v172
    %206 = vmatprep.subr.mxu0 0.0
    %207 = vmatpush1.msra.mxu0 %v171
    %208 = vmatprep.subr.mxu0 0.0
    %209 = vmatpush1.msra.mxu0 %v170
    %210 = vmatprep.subr.mxu0 0.0
    %211 = vmatpush1.msra.mxu0 %v169
    %212 = vmatprep.subr.mxu0 0.0
    %213 = vmatpush1.msra.mxu0 %v168
    %214 = vmatprep.subr.mxu0 0.0
    %215 = vmatpush1.msra.mxu0 %v167
    %216 = vmatprep.subr.mxu0 0.0
    %217 = vmatpush1.msra.mxu0 %v166
    %218 = vmatprep.subr.mxu0 0.0
    %219 = vmatpush1.msra.mxu0 %v165
    %220 = vmatprep.subr.mxu0 0.0
    %221 = vmatpush2.msra.mxu0 0.0
    %222 = vmatprep.subr.mxu0 0.0
    %223 = vmatpush2.msra.mxu0 0.0
    %224 = vmatprep.subr.mxu0 0.0
    %225 = vmatpush2.msra.mxu0 0.0
    %226 = vmatprep.subr.mxu0 0.0
    %227 = vmatpush2.msra.mxu0 0.0
    %228 = vmatprep.subr.mxu0 0.0
    %229 = vmatpush2.msra.mxu0 0.0
    %230 = vmatprep.subr.mxu0 0.0
    %231 = vmatpush2.msra.mxu0 0.0
    %232 = vmatprep.subr.mxu0 0.0
    %233 = vmatpush2.msra.mxu0 0.0
    %234 = vmatprep.subr.mxu0 0.0
    %235 = vmatpush2.msra.mxu0 0.0
    %236 = vmatprep.subr.mxu0 0.0
    %237 = vmatpush2.msra.mxu0 0.0
    %238 = vmatprep.subr.mxu0 0.0
    %239 = vmatpush2.msra.mxu0 0.0
    %240 = vmatprep.subr.mxu0 0.0
    %241 = vmatpush2.msra.mxu0 0.0
    %242 = vmatprep.subr.mxu0 0.0
    %243 = vmatpush2.msra.mxu0 0.0
    %244 = vmatprep.subr.mxu0 0.0
    %245 = vmatpush2.msra.mxu0 0.0
    %246 = vmatprep.subr.mxu0 0.0
    %247 = vmatpush2.msra.mxu0 0.0
    %248 = vmatprep.subr.mxu0 0.0
    %249 = vmatpush2.msra.mxu0 0.0
    %250 = vmatprep.subr.mxu0 0.0
    %251 = vmatpush2.msra.mxu0 0.0
    %252 = vmatprep.mubr.f32.mxu0 0.0
    %253 = vmatmul.mubr.f32.gmra.mxu0 %v164
    %v254 = vpop.f32.mrf.mxu0
    %v255 = vadd.f32 %v186, %v254
    %v256 = vpop.f32.mrf.mxu0
    %257 = vdwg.mxu0
    %v258 = vmax.f32 %v255, 0.0
    %v259 = vld [vmem:[#allocation8] sm:$0xff]
    %v260 = vld [vmem:[#allocation8 + $0x8] sm:$0xff]
    %v261 = vld [vmem:[#allocation8 + $0x10] sm:$0xff]
    %v262 = vld [vmem:[#allocation8 + $0x18] sm:$0xff]
    %v263 = vld [vmem:[#allocation8 + $0x20] sm:$0xff]
    %v264 = vld [vmem:[#allocation8 + $0x28] sm:$0xff]
    %v265 = vld [vmem:[#allocation8 + $0x30] sm:$0xff]
    %v266 = vld [vmem:[#allocation8 + $0x38] sm:$0xff]
    %v267 = vld [vmem:[#allocation8 + $0x40] sm:$0xff]
    %v268 = vld [vmem:[#allocation8 + $0x48] sm:$0xff]
    %v269 = vld [vmem:[#allocation8 + $0x50] sm:$0xff]
    %v270 = vld [vmem:[#allocation8 + $0x58] sm:$0xff]
    %v271 = vld [vmem:[#allocation8 + $0x60] sm:$0xff]
    %v272 = vld [vmem:[#allocation8 + $0x68] sm:$0xff]
    %v273 = vld [vmem:[#allocation8 + $0x70] sm:$0xff]
    %v274 = vld [vmem:[#allocation8 + $0x78] sm:$0xff]
    %v275 = vld [vmem:[%s6] sm:$0x1]
    %v277 = vlaneseq
    %v278 = vshrl.u32 %v277, 7
    %v279 = vsub.s32 0, %v278
    %v280 = vrot.slane %v275, %v279
    %282 = vmatprep.subr.mxu0 0.0
    %283 = vmatpush1.msra.mxu0 %v274
    %284 = vmatprep.subr.mxu0 0.0
    %285 = vmatpush1.msra.mxu0 %v273
    %286 = vmatprep.subr.mxu0 0.0
    %287 = vmatpush1.msra.mxu0 %v272
    %288 = vmatprep.subr.mxu0 0.0
    %289 = vmatpush1.msra.mxu0 %v271
    %290 = vmatprep.subr.mxu0 0.0
    %291 = vmatpush1.msra.mxu0 %v270
    %292 = vmatprep.subr.mxu0 0.0
    %293 = vmatpush1.msra.mxu0 %v269
    %294 = vmatprep.subr.mxu0 0.0
    %295 = vmatpush1.msra.mxu0 %v268
    %296 = vmatprep.subr.mxu0 0.0
    %297 = vmatpush1.msra.mxu0 %v267
    %298 = vmatprep.subr.mxu0 0.0
    %299 = vmatpush1.msra.mxu0 %v266
    %300 = vmatprep.subr.mxu0 0.0
    %301 = vmatpush1.msra.mxu0 %v265
    %302 = vmatprep.subr.mxu0 0.0
    %303 = vmatpush1.msra.mxu0 %v264
    %304 = vmatprep.subr.mxu0 0.0
    %305 = vmatpush1.msra.mxu0 %v263
    %306 = vmatprep.subr.mxu0 0.0
    %307 = vmatpush1.msra.mxu0 %v262
    %308 = vmatprep.subr.mxu0 0.0
    %309 = vmatpush1.msra.mxu0 %v261
    %310 = vmatprep.subr.mxu0 0.0
    %311 = vmatpush1.msra.mxu0 %v260
    %312 = vmatprep.subr.mxu0 0.0
    %313 = vmatpush1.msra.mxu0 %v259
    %314 = vmatprep.subr.mxu0 0.0
    %315 = vmatpush2.msra.mxu0 0.0
    %316 = vmatprep.subr.mxu0 0.0
    %317 = vmatpush2.msra.mxu0 0.0
    %318 = vmatprep.subr.mxu0 0.0
    %319 = vmatpush2.msra.mxu0 0.0
    %320 = vmatprep.subr.mxu0 0.0
    %321 = vmatpush2.msra.mxu0 0.0
    %322 = vmatprep.subr.mxu0 0.0
    %323 = vmatpush2.msra.mxu0 0.0
    %324 = vmatprep.subr.mxu0 0.0
    %325 = vmatpush2.msra.mxu0 0.0
    %326 = vmatprep.subr.mxu0 0.0
    %327 = vmatpush2.msra.mxu0 0.0
    %328 = vmatprep.subr.mxu0 0.0
    %329 = vmatpush2.msra.mxu0 0.0
    %330 = vmatprep.subr.mxu0 0.0
    %331 = vmatpush2.msra.mxu0 0.0
    %332 = vmatprep.subr.mxu0 0.0
    %333 = vmatpush2.msra.mxu0 0.0
    %334 = vmatprep.subr.mxu0 0.0
    %335 = vmatpush2.msra.mxu0 0.0
    %336 = vmatprep.subr.mxu0 0.0
    %337 = vmatpush2.msra.mxu0 0.0
    %338 = vmatprep.subr.mxu0 0.0
    %339 = vmatpush2.msra.mxu0 0.0
    %340 = vmatprep.subr.mxu0 0.0
    %341 = vmatpush2.msra.mxu0 0.0
    %342 = vmatprep.subr.mxu0 0.0
    %343 = vmatpush2.msra.mxu0 0.0
    %344 = vmatprep.subr.mxu0 0.0
    %345 = vmatpush2.msra.mxu0 0.0
    %346 = vmatprep.mubr.f32.mxu0 0.0
    %347 = vmatmul.mubr.f32.gmra.mxu0 %v258
    %v348 = vpop.f32.mrf.mxu0
    %v349 = vadd.f32 %v280, %v348
    %v350 = vpop.f32.mrf.mxu0
    %351 = vdwg.mxu0
    %352 = vmax.xlane.f32.xlu0 %v349
    %v353 = vpop.xlane.xlu0 %352
    %v354 = vsub.f32 %v349, %v353
    %v355 = vmul.f32 %v354, 1.442695
    %v356 = vpow.pop %v355
    %357 = vadd.xlane.f32.xlu0 %v356
    %v358 = vpop.xlane.xlu0 %357
    %v359 = vlog2.pop %v358
    %v360 = vmul.f32 %v359, 0.6931472
    %v361 = vsub.f32 %v354, %v360
    %vm362 = vcmask 64512
    %363 = vst.msk [vmem:[#allocation10] sm:$0xff] %vm362, %v361
    // Predicated region
    $region46: #{actor_forward.1} parent=1 // pred_check
      _
    $region47: #{actor_forward.1} parent=1 // pred_check_branch
      %365 = sbr.rel (0) target = $region49
    $region48: #{actor_forward.1} parent=1 // pred_region
      %s367 = ssub.s32 128, 128
      %368 = vsyncadd [#allocation4], %s367
      %s370 = sshll.u32 [#allocation10], 4
      %s371 = int_to_ptr.vmem [resolvable:$true] %s370
      %373 = dma.vmem_to_hbm [thread:$0]  %s371, 128, %s7, [#allocation4]
    $region49: #{actor_forward.1} parent=1 // pred_fallthru
      _
    // Predicated region
    $region50: #{actor_forward.1} parent=1 // pred_check
      _
    $region51: #{actor_forward.1} parent=1 // pred_check_branch
      %375 = sbr.rel (0) target = $region53
    $region52: #{actor_forward.1} parent=1 // pred_region
      %376 = dma.done [#allocation4], 128
    $region53: #{actor_forward.1} parent=1 // pred_fallthru
      _
    %377 = vsyncpa [#allocation3], 1
    %378 = vsyncpa [#allocation6], 1
    %379 = vsyncpa [#allocation9], 1
    %380 = vsyncpa [#allocation4], 1

</llo_original>
